<compile_context>
chip_gen: v6e
topology: v6e:2x2x1
jax: 0.10.0
libtpu: 0.0.40
codegen_flags: <defaults>
</compile_context>

<pallas_src>
import math

import jax
import jax.numpy as jnp
from jax.experimental import pallas as pl
from jax.experimental.pallas import tpu as pltpu

_MATMUL_DTYPE = jnp.bfloat16   # MXU operand dtype; accumulation is always f32.
_ACT_DTYPE = jnp.bfloat16      # inter-kernel activation dtype (HBM traffic).
_LN_EPS = 1e-5
_PAD_IDX = 1                   # RoBERTa padding_idx for position ids.

_ATTN_KEYS = ("wq", "bq", "wk", "bk", "wv", "bv", "wo", "bo", "ln1_g", "ln1_b")
_FFN_KEYS = ("w1", "b1", "w2", "b2", "ln2_g", "ln2_b")


# ---------------------------------------------------------------------------
# Shared math (used by both the Pallas kernel bodies and the pure-JAX ref).
# ---------------------------------------------------------------------------
def _layer_norm(x, gamma, beta):
    mean = jnp.mean(x, axis=-1, keepdims=True)
    var = jnp.mean(jnp.square(x - mean), axis=-1, keepdims=True)
    return (x - mean) * jax.lax.rsqrt(var + _LN_EPS) * gamma + beta


def _gelu(x):
    # tanh-approximate GELU (EUP tanh); f32 throughout.
    c = 0.7978845608028654  # sqrt(2/pi)
    return 0.5 * x * (1.0 + jnp.tanh(c * (x + 0.044715 * x * x * x)))


def _attention_block_math(x, mask, get, wq, bq, wk, bk, wv, bv, wo, bo,
                          ln_g, ln_b, *, num_heads, head_dim, recip,
                          ctx_scratch=None):
    """Self-attention + residual + LayerNorm for one sequence.

    x: (S, H) bf16; mask: (1, S) additive f32.  `get(r)` loads a weight at its
    use site (ref[...] inside the kernel, identity in the pure-JAX reference);
    `recip` is the reciprocal used for deferred softmax normalization.
    `ctx_scratch` is an (S, H) f32 VMEM scratch ref (kernel) or None (ref).
    """
    cd = _MATMUL_DTYPE
    scale = 1.0 / math.sqrt(head_dim)
    xf = x.astype(jnp.float32)
    xc = x.astype(cd)

    q = jnp.dot(xc, get(wq), preferred_element_type=jnp.float32) + get(bq)
    k = jnp.dot(xc, get(wk), preferred_element_type=jnp.float32) + get(bk)
    v = jnp.dot(xc, get(wv), preferred_element_type=jnp.float32) + get(bv)

    head_outs = []
    for h in range(num_heads):            # static unroll over heads
        sl = slice(h * head_dim, (h + 1) * head_dim)
        # Fold 1/sqrt(d) into q (S*d muls instead of S*S muls on the scores).
        qh = (q[:, sl] * scale).astype(cd)
        kh = k[:, sl].astype(cd)
        vh = v[:, sl].astype(cd)
        s = jnp.einsum("qd,kd->qk", qh, kh,
                       preferred_element_type=jnp.float32) + mask
        s = s - jnp.max(s, axis=-1, keepdims=True)
        e = jnp.exp(s)
        denom = jnp.sum(e, axis=-1, keepdims=True)
        # Deferred softmax normalization: PV with unnormalized exp, then one
        # (S, head_dim) scale by the reciprocal of the row sums.
        # TODO(synk): attention-prob dropout (identity in inference mode).
        ctx_h = jnp.dot(e.astype(cd), vh,
                        preferred_element_type=jnp.float32) * recip(denom)
        if ctx_scratch is not None:
            ctx_scratch[:, sl] = ctx_h        # straight into VMEM scratch
        else:
            head_outs.append(ctx_h)

    ctx = (ctx_scratch[...] if ctx_scratch is not None
           else jnp.concatenate(head_outs, axis=-1))
    attn = jnp.dot(ctx.astype(cd), get(wo),
                   preferred_element_type=jnp.float32) + get(bo)
    return _layer_norm(xf + attn, get(ln_g), get(ln_b))


def _ffn_block_math(x, get, w1, b1, w2, b2, ln_g, ln_b):
    cd = _MATMUL_DTYPE
    xf = x.astype(jnp.float32)
    ff = jnp.dot(x.astype(cd), get(w1),
                 preferred_element_type=jnp.float32) + get(b1)
    ff = _gelu(ff)
    ff = jnp.dot(ff.astype(cd), get(w2),
                 preferred_element_type=jnp.float32) + get(b2)
    return _layer_norm(xf + ff, get(ln_g), get(ln_b))


def _embed_block_math(word, pos, type_vec, ln_g, ln_b):
    return _layer_norm(word + pos + type_vec, ln_g, ln_b)


# ---------------------------------------------------------------------------
# Pallas kernels.
# ---------------------------------------------------------------------------
def _make_attn_kernel(num_heads, head_dim):
    def kernel(x_ref, mask_ref, wq, bq, wk, bk, wv, bv, wo, bo, g, b,
               o_ref, ctx_scratch):
        out = _attention_block_math(
            x_ref[0], mask_ref[0], lambda r: r[...],
            wq, bq, wk, bk, wv, bv, wo, bo, g, b,
            num_heads=num_heads, head_dim=head_dim,
            recip=lambda d: pl.reciprocal(d, approx=True),
            ctx_scratch=ctx_scratch)
        o_ref[0] = out.astype(o_ref.dtype)
    return kernel


def _ffn_kernel(x_ref, w1, b1, w2, b2, g, b, o_ref):
    out = _ffn_block_math(x_ref[0], lambda r: r[...], w1, b1, w2, b2, g, b)
    o_ref[0] = out.astype(o_ref.dtype)


def _embed_kernel(word_ref, pos_ref, type_ref, g_ref, b_ref, o_ref):
    out = _embed_block_math(word_ref[0], pos_ref[0], type_ref[...],
                            g_ref[...], b_ref[...])
    o_ref[0] = out.astype(o_ref.dtype)


# ---------------------------------------------------------------------------
# pallas_call wrappers.
# ---------------------------------------------------------------------------
def _nbytes(*arrays):
    return sum(int(a.size) * a.dtype.itemsize for a in arrays)


def _compiler_params(semantics, *, block_bytes, weight_bytes, scratch_bytes=0):
    # Size the scoped-VMEM ceiling from the actual footprint (defaults are
    # 16 MiB on v5e / 32 MiB on v6e,v7x): pipelined activation blocks and
    # constant-index weight blocks are double-buffered, plus scratch, plus
    # 1.5x headroom for compiler temporaries.
    needed = 2 * (block_bytes + weight_bytes) + scratch_bytes
    limit = int(min(max(needed * 3 // 2 + (4 << 20), 32 << 20), 100 << 20))
    return pltpu.CompilerParams(dimension_semantics=semantics,
                                vmem_limit_bytes=limit)


def embed_ln_pallas(word, pos, type_emb, ln_g, ln_b):
    """Fused (word + position + token-type) add and embedding LayerNorm."""
    B, S, H = word.shape
    in_specs = [
        pl.BlockSpec((1, S, H), lambda b: (b, 0, 0)),
        pl.BlockSpec((1, S, H), lambda b: (b, 0, 0)),
        pl.BlockSpec(type_emb.shape, lambda b: (0, 0)),
        pl.BlockSpec(ln_g.shape, lambda b: (0, 0)),
        pl.BlockSpec(ln_b.shape, lambda b: (0, 0)),
    ]
    block_bytes = 2 * S * H * 4 + S * H * jnp.dtype(_ACT_DTYPE).itemsize
    cp = _compiler_params(("parallel",), block_bytes=block_bytes,
                          weight_bytes=_nbytes(type_emb, ln_g, ln_b))
    return pl.pallas_call(
        _embed_kernel,
        out_shape=jax.ShapeDtypeStruct((B, S, H), _ACT_DTYPE),
        grid=(B,),
        in_specs=in_specs,
        out_specs=pl.BlockSpec((1, S, H), lambda b: (b, 0, 0)),
        compiler_params=cp,
    )(word, pos, type_emb, ln_g, ln_b)


def attention_block_pallas(x, add_mask, lp, *, num_heads, head_dim):
    """QKV + multi-head attention + output projection + residual + LN1."""
    B, S, H = x.shape
    weights = [lp[k] for k in _ATTN_KEYS]

    in_specs = [
        pl.BlockSpec((1, S, H), lambda b: (b, 0, 0)),      # hidden states
        pl.BlockSpec((1, 1, S), lambda b: (b, 0, 0)),      # additive mask
    ]
    # Weights: block == full array; index_map ignores the batch grid axis so
    # they stay VMEM-resident across grid steps.
    in_specs += [pl.BlockSpec(w.shape, lambda b: (0, 0)) for w in weights]

    out_bytes = B * S * H * jnp.dtype(_ACT_DTYPE).itemsize
    flops = B * (8 * S * H * H + 4 * S * S * H)
    transcendentals = B * (num_heads * S * S + num_heads * S + S)
    bytes_accessed = _nbytes(x, add_mask, *weights) + out_bytes

    cp = _compiler_params(
        ("parallel",),
        block_bytes=(_nbytes(x, add_mask) + out_bytes) // B,
        weight_bytes=_nbytes(*weights),
        scratch_bytes=S * H * 4)

    return pl.pallas_call(
        _make_attn_kernel(num_heads, head_dim),
        out_shape=jax.ShapeDtypeStruct((B, S, H), _ACT_DTYPE),
        grid=(B,),
        in_specs=in_specs,
        out_specs=pl.BlockSpec((1, S, H), lambda b: (b, 0, 0)),
        scratch_shapes=[pltpu.VMEM((S, H), jnp.float32)],
        compiler_params=cp,
        cost_estimate=pl.CostEstimate(flops=int(flops),
                                      transcendentals=int(transcendentals),
                                      bytes_accessed=int(bytes_accessed)),
    )(x, add_mask, *weights)


def ffn_block_pallas(x, lp, *, seq_tile=256):
    """GELU MLP + residual + LN2, tiled over (batch, sequence)."""
    B, S, H = x.shape
    F = lp["w1"].shape[1]
    weights = [lp[k] for k in _FFN_KEYS]
    ts = S if (S <= seq_tile or S % seq_tile) else seq_tile

    in_specs = [pl.BlockSpec((1, ts, H), lambda b, s: (b, s, 0))]
    in_specs += [pl.BlockSpec(w.shape, lambda b, s: (0, 0)) for w in weights]

    out_bytes = B * S * H * jnp.dtype(_ACT_DTYPE).itemsize
    flops = B * 4 * S * H * F
    transcendentals = B * (S * F + S)
    bytes_accessed = _nbytes(x, *weights) + out_bytes

    cp = _compiler_params(
        ("parallel", "parallel"),
        block_bytes=ts * H * (x.dtype.itemsize + jnp.dtype(_ACT_DTYPE).itemsize),
        weight_bytes=_nbytes(*weights),
        scratch_bytes=ts * F * 4)

    return pl.pallas_call(
        _ffn_kernel,
        out_shape=jax.ShapeDtypeStruct((B, S, H), _ACT_DTYPE),
        grid=(B, S // ts),
        in_specs=in_specs,
        out_specs=pl.BlockSpec((1, ts, H), lambda b, s: (b, s, 0)),
        compiler_params=cp,
        cost_estimate=pl.CostEstimate(flops=int(flops),
                                      transcendentals=int(transcendentals),
                                      bytes_accessed=int(bytes_accessed)),
    )(x, *weights)


# ---------------------------------------------------------------------------
# Forward pass (Pallas) and pure-JAX reference.
# ---------------------------------------------------------------------------
def _embedding_inputs(input_ids, attention_mask, params):
    """Gathers word/position embeddings; RoBERTa position ids skip pads."""
    B, S = input_ids.shape
    mask_i = attention_mask.astype(jnp.int32)
    position_ids = jnp.cumsum(mask_i, axis=1) * mask_i + _PAD_IDX
    word = jnp.take(params["word_emb"], input_ids, axis=0)
    pos = jnp.take(params["pos_emb"], position_ids, axis=0)
    add_mask = ((1.0 - attention_mask.astype(jnp.float32)) * -1e9
                ).reshape(B, 1, S)
    return word, pos, add_mask


def distil_roberta_encoder_forward(input_ids, attention_mask, params,
                                   *, num_heads, head_dim):
    """Matches DistilRobertaEncoder.forward: returns CLS features (B, H)."""
    word, pos, add_mask = _embedding_inputs(input_ids, attention_mask, params)
    h = embed_ln_pallas(word, pos, params["type_emb"],
                        params["emb_ln_g"], params["emb_ln_b"])
    for lp in params["layers"]:
        h = attention_block_pallas(h, add_mask, lp,
                                   num_heads=num_heads, head_dim=head_dim)
        h = ffn_block_pallas(h, lp)
    # forward() returns sequence_output[:, 0, :]; the module's pooler is unused.
    return h[:, 0, :].astype(jnp.float32)


def reference_forward(input_ids, attention_mask, params,
                      *, num_heads, head_dim):
    """Pure-JAX reference with identical math / casts (exact reciprocal)."""
    word, pos, add_mask = _embedding_inputs(input_ids, attention_mask, params)
    ident = lambda a: a
    recip = lambda d: 1.0 / d
    feats = []
    for b in range(input_ids.shape[0]):
        x = _embed_block_math(word[b], pos[b], params["type_emb"],
                              params["emb_ln_g"], params["emb_ln_b"]
                              ).astype(_ACT_DTYPE)
        for lp in params["layers"]:
            x = _attention_block_math(
                x, add_mask[b], ident, *[lp[k] for k in _ATTN_KEYS],
                num_heads=num_heads, head_dim=head_dim,
                recip=recip).astype(_ACT_DTYPE)
            x = _ffn_block_math(x, ident, *[lp[k] for k in _FFN_KEYS]
                                ).astype(_ACT_DTYPE)
        feats.append(x[0].astype(jnp.float32))
    return jnp.stack(feats, axis=0)


# ---------------------------------------------------------------------------
# Parameter init.
# ---------------------------------------------------------------------------
def init_params(key, *, vocab, max_pos, hidden, ffn, num_layers,
                weight_dtype=_MATMUL_DTYPE):
    k_emb, k_pos, k_typ, k_lng, k_lnb, k_layers = jax.random.split(key, 6)
    params = {
        "word_emb": 0.02 * jax.random.normal(k_emb, (vocab, hidden), jnp.float32),
        "pos_emb": 0.02 * jax.random.normal(k_pos, (max_pos, hidden), jnp.float32),
        "type_emb": 0.02 * jax.random.normal(k_typ, (1, hidden), jnp.float32),
        "emb_ln_g": 1.0 + 0.1 * jax.random.normal(k_lng, (1, hidden), jnp.float32),
        "emb_ln_b": 0.1 * jax.random.normal(k_lnb, (1, hidden), jnp.float32),
        "layers": [],
    }

    def w(k, fi, fo):   # weight stored pre-transposed (in, out), bf16
        return (0.02 * jax.random.normal(k, (fi, fo), jnp.float32)).astype(weight_dtype)

    def b(k, fo):       # bias / LN params stay f32
        return 0.02 * jax.random.normal(k, (1, fo), jnp.float32)

    for lk in jax.random.split(k_layers, num_layers):
        ks = jax.random.split(lk, 16)
        params["layers"].append({
            "wq": w(ks[0], hidden, hidden), "bq": b(ks[1], hidden),
            "wk": w(ks[2], hidden, hidden), "bk": b(ks[3], hidden),
            "wv": w(ks[4], hidden, hidden), "bv": b(ks[5], hidden),
            "wo": w(ks[6], hidden, hidden), "bo": b(ks[7], hidden),
            "ln1_g": 1.0 + 0.1 * jax.random.normal(ks[8], (1, hidden), jnp.float32),
            "ln1_b": 0.1 * jax.random.normal(ks[9], (1, hidden), jnp.float32),
            "w1": w(ks[10], hidden, ffn), "b1": b(ks[11], ffn),
            "w2": w(ks[12], ffn, hidden), "b2": b(ks[13], hidden),
            "ln2_g": 1.0 + 0.1 * jax.random.normal(ks[14], (1, hidden), jnp.float32),
            "ln2_b": 0.1 * jax.random.normal(ks[15], (1, hidden), jnp.float32),
        })
    return params


if __name__ == "__main__":
    # Small DistilRoBERTa-style config (real model: H=768, 12 heads, 6 layers,
    # F=3072, S~512).  HIDDEN multiple of 128 keeps every tile lane-dense.
    BATCH, SEQ, HIDDEN = 2, 16, 128
    NUM_HEADS, HEAD_DIM = 2, 64
    FFN, NUM_LAYERS = 256, 2
    VOCAB, MAX_POS = 100, 32

    root = jax.random.PRNGKey(0)
    k_ids, k_par = jax.random.split(root)
    input_ids = jax.random.randint(k_ids, (BATCH, SEQ), 0, VOCAB)
    attention_mask = jnp.ones((BATCH, SEQ), jnp.float32).at[1, 12:].set(0.0)

    params = init_params(k_par, vocab=VOCAB, max_pos=MAX_POS, hidden=HIDDEN,
                         ffn=FFN, num_layers=NUM_LAYERS)

    feat = distil_roberta_encoder_forward(
        input_ids, attention_mask, params,
        num_heads=NUM_HEADS, head_dim=HEAD_DIM)
    feat = jax.block_until_ready(feat)

    ref = reference_forward(input_ids, attention_mask, params,
                            num_heads=NUM_HEADS, head_dim=HEAD_DIM)
    assert feat.shape == (BATCH, HIDDEN), feat.shape
    max_err = float(jnp.max(jnp.abs(feat - ref)))
    assert jnp.allclose(feat, ref, atol=1e-2, rtol=1e-2), max_err
    print("KERNEL_OK")
</pallas_src>

<mosaic_0001>
module attributes {stable_mosaic.version = 11 : i64} {
  func.func @_embed_kernel(%arg0: i32, %arg1: memref<1x16x128xf32, #tpu.memory_space<vmem>>, %arg2: memref<1x16x128xf32, #tpu.memory_space<vmem>>, %arg3: memref<1x128xf32, #tpu.memory_space<vmem>>, %arg4: memref<1x128xf32, #tpu.memory_space<vmem>>, %arg5: memref<1x128xf32, #tpu.memory_space<vmem>>, %arg6: memref<1x16x128xbf16, #tpu.memory_space<vmem>>) attributes {dimension_semantics = [#tpu.dimension_semantics<parallel>], iteration_bounds = array<i64: 2>, scalar_prefetch = 0 : i64, scratch_operands = 0 : i64, tpu.core_type = #tpu.core_type<tc>, window_params = [{transform_indices = @transform_0, window_bounds = array<i64: 1, 16, 128>}, {transform_indices = @transform_1, window_bounds = array<i64: 1, 16, 128>}, {pipeline_mode = #tpu.pipeline_mode<synchronous>, transform_indices = @transform_2, window_bounds = array<i64: 1, 128>}, {pipeline_mode = #tpu.pipeline_mode<synchronous>, transform_indices = @transform_3, window_bounds = array<i64: 1, 128>}, {pipeline_mode = #tpu.pipeline_mode<synchronous>, transform_indices = @transform_4, window_bounds = array<i64: 1, 128>}, {transform_indices = @transform_5, window_bounds = array<i64: 1, 16, 128>}]} {
    %c0 = arith.constant 0 : index
    %c0_0 = arith.constant 0 : index
    %c0_1 = arith.constant 0 : index
    %0 = vector.load %arg1[%c0, %c0_0, %c0_1] : memref<1x16x128xf32, #tpu.memory_space<vmem>>, vector<1x16x128xf32>
    %1 = vector.shape_cast %0 : vector<1x16x128xf32> to vector<16x128xf32>
    %c0_2 = arith.constant 0 : index
    %c0_3 = arith.constant 0 : index
    %c0_4 = arith.constant 0 : index
    %2 = vector.load %arg2[%c0_2, %c0_3, %c0_4] : memref<1x16x128xf32, #tpu.memory_space<vmem>>, vector<1x16x128xf32>
    %3 = vector.shape_cast %2 : vector<1x16x128xf32> to vector<16x128xf32>
    %c0_5 = arith.constant 0 : index
    %c0_6 = arith.constant 0 : index
    %4 = vector.load %arg3[%c0_5, %c0_6] : memref<1x128xf32, #tpu.memory_space<vmem>>, vector<1x128xf32>
    %c0_7 = arith.constant 0 : index
    %c0_8 = arith.constant 0 : index
    %5 = vector.load %arg4[%c0_7, %c0_8] : memref<1x128xf32, #tpu.memory_space<vmem>>, vector<1x128xf32>
    %c0_9 = arith.constant 0 : index
    %c0_10 = arith.constant 0 : index
    %6 = vector.load %arg5[%c0_9, %c0_10] : memref<1x128xf32, #tpu.memory_space<vmem>>, vector<1x128xf32>
    %7 = arith.addf %1, %3 : vector<16x128xf32>
    %8 = vector.broadcast %4 : vector<1x128xf32> to vector<16x128xf32>
    %9 = arith.addf %7, %8 : vector<16x128xf32>
    %cst = arith.constant dense<0.000000e+00> : vector<16xf32>
    %10 = vector.multi_reduction <add>, %9, %cst [1] : vector<16x128xf32> to vector<16xf32>
    %11 = vector.shape_cast %10 : vector<16xf32> to vector<16x1xf32>
    %cst_11 = arith.constant 1.280000e+02 : f32
    %12 = vector.broadcast %cst_11 : f32 to vector<16x1xf32>
    %13 = arith.divf %11, %12 : vector<16x1xf32>
    %14 = vector.broadcast %13 : vector<16x1xf32> to vector<16x128xf32>
    %15 = arith.subf %9, %14 : vector<16x128xf32>
    %16 = arith.mulf %15, %15 : vector<16x128xf32>
    %cst_12 = arith.constant dense<0.000000e+00> : vector<16xf32>
    %17 = vector.multi_reduction <add>, %16, %cst_12 [1] : vector<16x128xf32> to vector<16xf32>
    %18 = vector.shape_cast %17 : vector<16xf32> to vector<16x1xf32>
    %cst_13 = arith.constant 1.280000e+02 : f32
    %19 = vector.broadcast %cst_13 : f32 to vector<16x1xf32>
    %20 = arith.divf %18, %19 : vector<16x1xf32>
    %21 = vector.broadcast %13 : vector<16x1xf32> to vector<16x128xf32>
    %22 = arith.subf %9, %21 : vector<16x128xf32>
    %cst_14 = arith.constant 9.99999974E-6 : f32
    %23 = vector.broadcast %cst_14 : f32 to vector<16x1xf32>
    %24 = arith.addf %20, %23 : vector<16x1xf32>
    %25 = math.rsqrt %24 : vector<16x1xf32>
    %26 = vector.broadcast %25 : vector<16x1xf32> to vector<16x128xf32>
    %27 = arith.mulf %22, %26 : vector<16x128xf32>
    %28 = vector.broadcast %5 : vector<1x128xf32> to vector<16x128xf32>
    %29 = arith.mulf %27, %28 : vector<16x128xf32>
    %30 = vector.broadcast %6 : vector<1x128xf32> to vector<16x128xf32>
    %31 = arith.addf %29, %30 : vector<16x128xf32>
    %32 = arith.truncf %31 : vector<16x128xf32> to vector<16x128xbf16>
    %c0_15 = arith.constant 0 : index
    %c0_16 = arith.constant 0 : index
    %c0_17 = arith.constant 0 : index
    %33 = vector.load %arg6[%c0_15, %c0_16, %c0_17] : memref<1x16x128xbf16, #tpu.memory_space<vmem>>, vector<1x16x128xbf16>
    %34 = vector.shape_cast %33 : vector<1x16x128xbf16> to vector<16x128xbf16>
    %35 = vector.shape_cast %32 : vector<16x128xbf16> to vector<1x16x128xbf16>
    tpu.vector_store %arg6[%c0_15, %c0_16, %c0_17], %35 {strides = array<i32>} : memref<1x16x128xbf16, #tpu.memory_space<vmem>>, vector<1x16x128xbf16>,
    return
  }
  func.func @transform_0(%arg0: i32) -> (i32, i32, i32) {
    %c0_i32 = arith.constant 0 : i32
    %c0_i32_0 = arith.constant 0 : i32
    %c0_i32_1 = arith.constant 0 : i32
    return %arg0, %c0_i32, %c0_i32_0 : i32, i32, i32
  }
  func.func @transform_1(%arg0: i32) -> (i32, i32, i32) {
    %c0_i32 = arith.constant 0 : i32
    %c0_i32_0 = arith.constant 0 : i32
    %c0_i32_1 = arith.constant 0 : i32
    return %arg0, %c0_i32, %c0_i32_0 : i32, i32, i32
  }
  func.func @transform_2(%arg0: i32) -> (i32, i32) {
    %c0_i32 = arith.constant 0 : i32
    %c0_i32_0 = arith.constant 0 : i32
    %c0_i32_1 = arith.constant 0 : i32
    return %c0_i32, %c0_i32_0 : i32, i32
  }
  func.func @transform_3(%arg0: i32) -> (i32, i32) {
    %c0_i32 = arith.constant 0 : i32
    %c0_i32_0 = arith.constant 0 : i32
    %c0_i32_1 = arith.constant 0 : i32
    return %c0_i32, %c0_i32_0 : i32, i32
  }
  func.func @transform_4(%arg0: i32) -> (i32, i32) {
    %c0_i32 = arith.constant 0 : i32
    %c0_i32_0 = arith.constant 0 : i32
    %c0_i32_1 = arith.constant 0 : i32
    return %c0_i32, %c0_i32_0 : i32, i32
  }
  func.func @transform_5(%arg0: i32) -> (i32, i32, i32) {
    %c0_i32 = arith.constant 0 : i32
    %c0_i32_0 = arith.constant 0 : i32
    %c0_i32_1 = arith.constant 0 : i32
    return %arg0, %c0_i32, %c0_i32_0 : i32, i32, i32
  }
}

</mosaic_0001>

<llo_original>
// kernel: tpu_custom_call.1
$region0: #{tpu_custom_call.1}
  #allocation0 [shape = 'u32[]', space=smem, size = 0x4, offset = 0x4, fixed_abs, tag = 'smem constant byte address 0x4 - core index']
  #allocation1 [shape = 'u32[144,128]{1,0:T(1,128)}', space=vmem, size = 0x12000, scoped, tag = 'internal scratch']
  %s0 = inlined_call_operand.hbm [shape: f32[2,16,128], index: 0, kind: input, shape index: {}]
  %s1 = inlined_call_operand.hbm [shape: f32[2,16,128], index: 1, kind: input, shape index: {}]
  %s2 = inlined_call_operand.vmem [shape: f32[1,128], index: 2, kind: input, shape index: {}]
  %s3 = inlined_call_operand.vmem [shape: f32[1,128], index: 3, kind: input, shape index: {}]
  %s4 = inlined_call_operand.vmem [shape: f32[1,128], index: 4, kind: input, shape index: {}]
  %s5 = inlined_call_operand.hbm [shape: bf16[2,16,128], index: 5, kind: output, shape index: {}]
  %s6 = sld [smem:[#allocation0]]
  $region61: #{tpu_custom_call.1} parent=0
    _
  %s8 = ssub.s32 1, %s6
  %s9 = scalar_select 0, %s8, %s6
  $region1: #{tpu_custom_call.1} parent=0
    #allocation2 [shape = 'u8[16384]{0}', space=vmem, size = 0x4000, scoped, tag = 'input window, operand 0']
    #allocation3 [shape = 's32[2]{0}', space=sflag, size = 0x8, scoped, tag = 'scoped memory for tpu_custom_call.1']
    #allocation4 [shape = 's32[2]{0}', space=sflag, size = 0x8, scoped, tag = 'scoped memory for tpu_custom_call.1']
    #allocation5 [shape = 'u8[16384]{0}', space=vmem, size = 0x4000, scoped, tag = 'input window, operand 1']
    #allocation6 [shape = 's32[2]{0}', space=sflag, size = 0x8, scoped, tag = 'scoped memory for tpu_custom_call.1']
    #allocation7 [shape = 'u8[8192]{0}', space=vmem, size = 0x2000, scoped, tag = 'output window, operand 0']
    %10 = vsyncpa [#allocation3], 0
    %s11 = scalar_lea.sflag [#allocation3], 1
    %12 = vsyncpa %s11, 0
    %13 = vsyncpa [#allocation6], 0
    %s14 = scalar_lea.sflag [#allocation6], 1
    %15 = vsyncpa %s14, 0
    %16 = vsyncpa [#allocation4], 0
    %s17 = scalar_lea.sflag [#allocation4], 1
    %18 = vsyncpa %s17, 0
    loop: start=0, step=1, limit=4
    $region2: #{tpu_custom_call.1} parent=1 // loop_pre_header
      _
    $region3: #{tpu_custom_call.1} parent=1 // loop_header
      %s20 = sphi 0, %s24
      %p21 = scmp.ge.s32.totalorder %s20, 4
      %s30 = sphi 0, %s32
      %s33 = sphi 0, %s30
      %s34 = sphi 0, %s33
      %s50 = sphi 0, %s34
      %s56 = sphi 0, %s58
      %s59 = sphi 0, %s56
      %s60 = sphi 0, %s59
      %s76 = sphi 0, %s60
      %s80 = sphi 0, %s80
      %s82 = sphi 0, %s80
      %s83 = sphi 0, %s82
      %s97 = sphi 0, %s83
      %s101 = sphi 0, %s101
      %s103 = sphi 0, %s101
      %s104 = sphi 0, %s103
      %s118 = sphi 0, %s104
      %s122 = sphi 0, %s122
      %s124 = sphi 0, %s122
      %s125 = sphi 0, %s124
      %s139 = sphi 0, %s125
      %s145 = sphi 0, %s147
      %s148 = sphi 0, %s145
      %s149 = sphi 0, %s148
      %s165 = sphi 0, %s149
    $region4: #{tpu_custom_call.1} parent=1 // loop_header_branch
      %23 = sbr.rel (%p21) target = $region8
    $region5: #{tpu_custom_call.1} parent=1 // loop_body
      %s25 = ssub.s32 %s20, 1
      %s26 = ssub.s32 %s20, 2
      %s27 = sadd.s32 %s20, 1
      %s28 = ssub.s32 %s20, %s27
      %p29 = scmp.eq.s32.totalorder %s28, 0
      %s31 = sadd.s32 %s30, 1
      %s32 = scalar_select %p29, %s30, %s31
      %p35 = pneg %p29
      %p36 = scmp.eq.s32.totalorder %s20, 1
      %p37 = por %p35, %p36
      %p38 = scmp.ne.s32.totalorder %s30, %s33
      %p39 = scmp.eq.s32.totalorder %s20, 0
      %p40 = por %p38, %p39
      %p41 = scmp.ne.s32.totalorder %s30, %s33
      %p42 = scmp.eq.s32.totalorder %s25, 1
      %p43 = por %p41, %p42
      %p44 = scmp.ne.s32.totalorder %s33, %s34
      %p45 = scmp.eq.s32.totalorder %s25, 0
      %p46 = por %p44, %p45
      %p47 = scmp.ne.s32.totalorder %s33, %s34
      %p48 = scmp.eq.s32.totalorder %s26, 1
      %p49 = por %p47, %p48
      %p51 = scmp.ne.s32.totalorder %s34, %s50
      %p52 = scmp.eq.s32.totalorder %s26, 0
      %p53 = por %p51, %p52
      %s54 = ssub.s32 %s20, %s27
      %p55 = scmp.eq.s32.totalorder %s54, 0
      %s57 = sadd.s32 %s56, 1
      %s58 = scalar_select %p55, %s56, %s57
      %p61 = pneg %p55
      %p62 = scmp.eq.s32.totalorder %s20, 1
      %p63 = por %p61, %p62
      %p64 = scmp.ne.s32.totalorder %s56, %s59
      %p65 = scmp.eq.s32.totalorder %s20, 0
      %p66 = por %p64, %p65
      %p67 = scmp.ne.s32.totalorder %s56, %s59
      %p68 = scmp.eq.s32.totalorder %s25, 1
      %p69 = por %p67, %p68
      %p70 = scmp.ne.s32.totalorder %s59, %s60
      %p71 = scmp.eq.s32.totalorder %s25, 0
      %p72 = por %p70, %p71
      %p73 = scmp.ne.s32.totalorder %s59, %s60
      %p74 = scmp.eq.s32.totalorder %s26, 1
      %p75 = por %p73, %p74
      %p77 = scmp.ne.s32.totalorder %s60, %s76
      %p78 = scmp.eq.s32.totalorder %s26, 0
      %p79 = por %p77, %p78
      %s81 = sadd.s32 %s80, 1
      %p84 = scmp.eq.s32.totalorder %s20, 1
      %p85 = scmp.ne.s32.totalorder %s80, %s82
      %p86 = scmp.eq.s32.totalorder %s20, 0
      %p87 = por %p85, %p86
      %p88 = scmp.ne.s32.totalorder %s80, %s82
      %p89 = scmp.eq.s32.totalorder %s25, 1
      %p90 = por %p88, %p89
      %p91 = scmp.ne.s32.totalorder %s82, %s83
      %p92 = scmp.eq.s32.totalorder %s25, 0
      %p93 = por %p91, %p92
      %p94 = scmp.ne.s32.totalorder %s82, %s83
      %p95 = scmp.eq.s32.totalorder %s26, 1
      %p96 = por %p94, %p95
      %p98 = scmp.ne.s32.totalorder %s83, %s97
      %p99 = scmp.eq.s32.totalorder %s26, 0
      %p100 = por %p98, %p99
      %s102 = sadd.s32 %s101, 1
      %p105 = scmp.eq.s32.totalorder %s20, 1
      %p106 = scmp.ne.s32.totalorder %s101, %s103
      %p107 = scmp.eq.s32.totalorder %s20, 0
      %p108 = por %p106, %p107
      %p109 = scmp.ne.s32.totalorder %s101, %s103
      %p110 = scmp.eq.s32.totalorder %s25, 1
      %p111 = por %p109, %p110
      %p112 = scmp.ne.s32.totalorder %s103, %s104
      %p113 = scmp.eq.s32.totalorder %s25, 0
      %p114 = por %p112, %p113
      %p115 = scmp.ne.s32.totalorder %s103, %s104
      %p116 = scmp.eq.s32.totalorder %s26, 1
      %p117 = por %p115, %p116
      %p119 = scmp.ne.s32.totalorder %s104, %s118
      %p120 = scmp.eq.s32.totalorder %s26, 0
      %p121 = por %p119, %p120
      %s123 = sadd.s32 %s122, 1
      %p126 = scmp.eq.s32.totalorder %s20, 1
      %p127 = scmp.ne.s32.totalorder %s122, %s124
      %p128 = scmp.eq.s32.totalorder %s20, 0
      %p129 = por %p127, %p128
      %p130 = scmp.ne.s32.totalorder %s122, %s124
      %p131 = scmp.eq.s32.totalorder %s25, 1
      %p132 = por %p130, %p131
      %p133 = scmp.ne.s32.totalorder %s124, %s125
      %p134 = scmp.eq.s32.totalorder %s25, 0
      %p135 = por %p133, %p134
      %p136 = scmp.ne.s32.totalorder %s124, %s125
      %p137 = scmp.eq.s32.totalorder %s26, 1
      %p138 = por %p136, %p137
      %p140 = scmp.ne.s32.totalorder %s125, %s139
      %p141 = scmp.eq.s32.totalorder %s26, 0
      %p142 = por %p140, %p141
      %s143 = ssub.s32 %s20, %s27
      %p144 = scmp.eq.s32.totalorder %s143, 0
      %s146 = sadd.s32 %s145, 1
      %s147 = scalar_select %p144, %s145, %s146
      %p150 = pneg %p144
      %p151 = scmp.eq.s32.totalorder %s20, 1
      %p152 = por %p150, %p151
      %p153 = scmp.ne.s32.totalorder %s145, %s148
      %p154 = scmp.eq.s32.totalorder %s20, 0
      %p155 = por %p153, %p154
      %p156 = scmp.ne.s32.totalorder %s145, %s148
      %p157 = scmp.eq.s32.totalorder %s25, 1
      %p158 = por %p156, %p157
      %p159 = scmp.ne.s32.totalorder %s148, %s149
      %p160 = scmp.eq.s32.totalorder %s25, 0
      %p161 = por %p159, %p160
      %p162 = scmp.ne.s32.totalorder %s148, %s149
      %p163 = scmp.eq.s32.totalorder %s26, 1
      %p164 = por %p162, %p163
      %p166 = scmp.ne.s32.totalorder %s149, %s165
      %p167 = scmp.eq.s32.totalorder %s26, 0
      %p168 = por %p166, %p167
      %p169 = scmp.le.s32.totalorder 1, %s20
      %p170 = scmp.lt.s32.totalorder %s20, 3
      %p171 = pnand %p169, %p170
      %p172 = pneg %p171
      // Predicated region
      $region9: #{tpu_custom_call.1} parent=5 // pred_check
        _
      $region10: #{tpu_custom_call.1} parent=5 // pred_check_branch
        %174 = sbr.rel (%p171) target = $region12
      $region11: #{tpu_custom_call.1} parent=5 // pred_region
        %s175 = ssub.s32 %s20, 1
        // Predicated region
        $region13: #{tpu_custom_call.1} parent=11 // pred_check
          %p176 = pneg %p93
        $region14: #{tpu_custom_call.1} parent=11 // pred_check_branch
          %178 = sbr.rel (%p176) target = $region16
        $region15: #{tpu_custom_call.1} parent=11 // pred_region
          _
        $region16: #{tpu_custom_call.1} parent=11 // pred_fallthru
          _
        // Predicated region
        $region17: #{tpu_custom_call.1} parent=11 // pred_check
          %p179 = pneg %p114
        $region18: #{tpu_custom_call.1} parent=11 // pred_check_branch
          %181 = sbr.rel (%p179) target = $region20
        $region19: #{tpu_custom_call.1} parent=11 // pred_region
          _
        $region20: #{tpu_custom_call.1} parent=11 // pred_fallthru
          _
        // Predicated region
        $region21: #{tpu_custom_call.1} parent=11 // pred_check
          %p182 = pneg %p135
        $region22: #{tpu_custom_call.1} parent=11 // pred_check_branch
          %184 = sbr.rel (%p182) target = $region24
        $region23: #{tpu_custom_call.1} parent=11 // pred_region
          _
        $region24: #{tpu_custom_call.1} parent=11 // pred_fallthru
          _
      $region12: #{tpu_custom_call.1} parent=5 // pred_fallthru
        _
      %p185 = scmp.lt.s32.totalorder %s20, 2
      // Predicated region
      $region25: #{tpu_custom_call.1} parent=5 // pred_check
        %p186 = pneg %p185
      $region26: #{tpu_custom_call.1} parent=5 // pred_check_branch
        %188 = sbr.rel (%p186) target = $region28
      $region27: #{tpu_custom_call.1} parent=5 // pred_region
        // Predicated region
        $region29: #{tpu_custom_call.1} parent=27 // pred_check
          %p189 = pneg %p40
        $region30: #{tpu_custom_call.1} parent=27 // pred_check_branch
          %191 = sbr.rel (%p189) target = $region32
        $region31: #{tpu_custom_call.1} parent=27 // pred_region
          %s192 = sand.u32 %s30, 1
          %s193 = scalar_lea.sflag [#allocation3], %s192
          %s194 = sand.u32 %s30, 1
          %s195 = smul.addr %s194, 16
          %s196 = scalar_lea.vmem [#allocation2], %s195
          %s198 = ssub.s32 256, 256
          %199 = vsyncadd %s193, %s198
          %s200 = smul.addr %s20, 2
          %s201 = smul.addr %s200, 128
          %s202 = scalar_lea.hbm %s0, %s201
          %s203 = sshll.u32 %s196, 4
          %s204 = int_to_ptr.vmem [resolvable:$true] %s203
          %209 = dma.hbm_to_vmem [thread:$0]  %s202, 256, %s204, %s193, 128, 128, 8
        $region32: #{tpu_custom_call.1} parent=27 // pred_fallthru
          _
        // Predicated region
        $region33: #{tpu_custom_call.1} parent=27 // pred_check
          %p210 = pneg %p66
        $region34: #{tpu_custom_call.1} parent=27 // pred_check_branch
          %212 = sbr.rel (%p210) target = $region36
        $region35: #{tpu_custom_call.1} parent=27 // pred_region
          %s213 = sand.u32 %s56, 1
          %s214 = scalar_lea.sflag [#allocation6], %s213
          %s215 = sand.u32 %s56, 1
          %s216 = smul.addr %s215, 16
          %s217 = scalar_lea.vmem [#allocation5], %s216
          %s219 = ssub.s32 256, 256
          %220 = vsyncadd %s214, %s219
          %s221 = smul.addr %s20, 2
          %s222 = smul.addr %s221, 128
          %s223 = scalar_lea.hbm %s1, %s222
          %s224 = sshll.u32 %s217, 4
          %s225 = int_to_ptr.vmem [resolvable:$true] %s224
          %230 = dma.hbm_to_vmem [thread:$0]  %s223, 256, %s225, %s214, 128, 128, 8
        $region36: #{tpu_custom_call.1} parent=27 // pred_fallthru
          _
      $region28: #{tpu_custom_call.1} parent=5 // pred_fallthru
        _
      %p231 = scmp.le.s32.totalorder 1, %s20
      %p232 = scmp.lt.s32.totalorder %s20, 3
      %p233 = pnand %p231, %p232
      %p234 = pneg %p233
      // Predicated region
      $region37: #{tpu_custom_call.1} parent=5 // pred_check
        _
      $region38: #{tpu_custom_call.1} parent=5 // pred_check_branch
        %236 = sbr.rel (%p233) target = $region40
      $region39: #{tpu_custom_call.1} parent=5 // pred_region
        %s237 = ssub.s32 %s20, 1
        %s238 = sand.u32 %s33, 1
        %s239 = scalar_lea.sflag [#allocation3], %s238
        %s240 = sand.u32 %s33, 1
        %s241 = smul.addr %s240, 16
        %s242 = scalar_lea.vmem [#allocation2], %s241
        // Predicated region
        $region41: #{tpu_custom_call.1} parent=39 // pred_check
          %p243 = pneg %p46
        $region42: #{tpu_custom_call.1} parent=39 // pred_check_branch
          %245 = sbr.rel (%p243) target = $region44
        $region43: #{tpu_custom_call.1} parent=39 // pred_region
          %246 = dma.done %s239, 256
        $region44: #{tpu_custom_call.1} parent=39 // pred_fallthru
          _
        %s247 = sand.u32 %s59, 1
        %s248 = scalar_lea.sflag [#allocation6], %s247
        %s249 = sand.u32 %s59, 1
        %s250 = smul.addr %s249, 16
        %s251 = scalar_lea.vmem [#allocation5], %s250
        // Predicated region
        $region45: #{tpu_custom_call.1} parent=39 // pred_check
          %p252 = pneg %p72
        $region46: #{tpu_custom_call.1} parent=39 // pred_check_branch
          %254 = sbr.rel (%p252) target = $region48
        $region47: #{tpu_custom_call.1} parent=39 // pred_region
          %255 = dma.done %s248, 256
        $region48: #{tpu_custom_call.1} parent=39 // pred_fallthru
          _
        %s256 = sand.u32 %s33, 1
        %s257 = scalar_lea.sflag [#allocation3], %s256
        %s258 = sand.u32 %s33, 1
        %s259 = smul.addr %s258, 16
        %s260 = scalar_lea.vmem [#allocation2], %s259
        %p261 = pneg %p46
        %p262 = pneg %p43
        %s263 = sand.u32 %s59, 1
        %s264 = scalar_lea.sflag [#allocation6], %s263
        %s265 = sand.u32 %s59, 1
        %s266 = smul.addr %s265, 16
        %s267 = scalar_lea.vmem [#allocation5], %s266
        %p268 = pneg %p72
        %p269 = pneg %p69
        %p270 = pneg %p93
        %p271 = pneg %p90
        %p272 = pneg %p114
        %p273 = pneg %p111
        %p274 = pneg %p135
        %p275 = pneg %p132
        %p276 = pneg %p161
        %p277 = pneg %p158
        %s278 = sand.u32 %s148, 1
        %s279 = scalar_lea.sflag [#allocation4], %s278
        %s280 = sand.u32 %s148, 1
        %s281 = smul.addr %s280, 8
        %s282 = scalar_lea.vmem [#allocation7], %s281
        %v283 = vld [vmem:[%s242] sm:$0xff]
        %v284 = vld [vmem:[%s242 + $0x8] sm:$0xff]
        %v285 = vld [vmem:[%s251] sm:$0xff]
        %v286 = vld [vmem:[%s251 + $0x8] sm:$0xff]
        %v287 = vld [vmem:[%s2] sm:$0x1]
        %v288 = vld [vmem:[%s3] sm:$0x1]
        %v289 = vld [vmem:[%s4] sm:$0x1]
        %v290 = vadd.f32 %v283, %v285
        %v291 = vadd.f32 %v284, %v286
        %v293 = vlaneseq
        %v294 = vshrl.u32 %v293, 7
        %v295 = vsub.s32 0, %v294
        %v296 = vrot.slane %v287, %v295
        %v298 = vadd.f32 %v290, %v296
        %v299 = vadd.f32 %v291, %v296
        %300 = vadd.xlane.f32.xlu0 %v298
        %v301 = vpop.xlane.xlu0 %300
        %302 = vadd.xlane.f32.xlu0 %v299
        %v303 = vpop.xlane.xlu0 %302
        %v304 = vrcp.pop 128.0
        %v305 = vmul.f32 %v301, %v304
        %v306 = vmul.f32 %v303, %v304
        %v307 = vsub.f32 %v298, %v305
        %v308 = vsub.f32 %v299, %v306
        %v309 = vmul.f32 %v307, %v307
        %v310 = vmul.f32 %v308, %v308
        %311 = vadd.xlane.f32.xlu0 %v309
        %v312 = vpop.xlane.xlu0 %311
        %313 = vadd.xlane.f32.xlu0 %v310
        %v314 = vpop.xlane.xlu0 %313
        %v315 = vmul.f32 %v312, %v304
        %v316 = vmul.f32 %v314, %v304
        %v317 = vadd.f32 %v315, 1e-05
        %v318 = vadd.f32 %v316, 1e-05
        %v319 = vrsqrt.pop %v317
        %v320 = vrsqrt.pop %v318
        %v321 = vmul.f32 %v307, %v319
        %v322 = vmul.f32 %v308, %v320
        %v324 = vlaneseq
        %v325 = vshrl.u32 %v324, 7
        %v326 = vsub.s32 0, %v325
        %v327 = vrot.slane %v288, %v326
        %v329 = vmul.f32 %v321, %v327
        %v330 = vmul.f32 %v322, %v327
        %v332 = vlaneseq
        %v333 = vshrl.u32 %v332, 7
        %v334 = vsub.s32 0, %v333
        %v335 = vrot.slane %v289, %v334
        %v337 = vadd.f32 %v329, %v335
        %v338 = vadd.f32 %v330, %v335
        %v339 = vpack.c.bf16 %v338, %v337
        %v341 = vunpack.c.l.b16 %v339
        %v342 = vunpack.c.h.b16 %v339
        %v343 = vpack.c.b16 %v341, %v341
        %v344 = vpack.c.b16 %v342, %v342
        %347 = vst [vmem:[%s282] sm:$0xf] %v343
        %348 = vst [vmem:[%s282 + $0x4] sm:$0xf] %v344
        %s349 = sand.u32 %s148, 1
        %s350 = scalar_lea.sflag [#allocation4], %s349
        %s351 = sand.u32 %s148, 1
        %s352 = smul.addr %s351, 8
        %s353 = scalar_lea.vmem [#allocation7], %s352
        // Predicated region
        $region49: #{tpu_custom_call.1} parent=39 // pred_check
          %p354 = pneg %p158
        $region50: #{tpu_custom_call.1} parent=39 // pred_check_branch
          %356 = sbr.rel (%p354) target = $region52
        $region51: #{tpu_custom_call.1} parent=39 // pred_region
          %s358 = ssub.s32 128, 128
          %359 = vsyncadd %s350, %s358
          %s360 = smul.addr %s25, 2
          %s361 = smul.addr %s360, 64
          %s362 = scalar_lea.hbm %s5, %s361
          %s363 = sshll.u32 %s353, 4
          %s364 = int_to_ptr.vmem [resolvable:$true] %s363
          %369 = dma.vmem_to_hbm [thread:$0]  %s364, 128, %s362, %s350, 64, 64, 4
        $region52: #{tpu_custom_call.1} parent=39 // pred_fallthru
          _
      $region40: #{tpu_custom_call.1} parent=5 // pred_fallthru
        _
      %p370 = scmp.le.s32.totalorder 2, %s20
      // Predicated region
      $region53: #{tpu_custom_call.1} parent=5 // pred_check
        %p371 = pneg %p370
      $region54: #{tpu_custom_call.1} parent=5 // pred_check_branch
        %373 = sbr.rel (%p371) target = $region56
      $region55: #{tpu_custom_call.1} parent=5 // pred_region
        %s374 = ssub.s32 %s20, 2
        // Predicated region
        $region57: #{tpu_custom_call.1} parent=55 // pred_check
          %p375 = pneg %p164
        $region58: #{tpu_custom_call.1} parent=55 // pred_check_branch
          %377 = sbr.rel (%p375) target = $region60
        $region59: #{tpu_custom_call.1} parent=55 // pred_region
          %s378 = sand.u32 %s149, 1
          %s379 = scalar_lea.sflag [#allocation4], %s378
          %s380 = sand.u32 %s149, 1
          %s381 = smul.addr %s380, 8
          %s382 = scalar_lea.vmem [#allocation7], %s381
          %383 = dma.done %s379, 128
        $region60: #{tpu_custom_call.1} parent=55 // pred_fallthru
          _
      $region56: #{tpu_custom_call.1} parent=5 // pred_fallthru
        _
    $region6: #{tpu_custom_call.1} parent=1 // loop_footer
      %s24 = sadd.s32 1, %s20
    $region7: #{tpu_custom_call.1} parent=1 // loop_footer_branch
      %19 = sbr.rel target = $region3
    $region8: #{tpu_custom_call.1} parent=1 // loop_exit
      _
    %384 = vsyncpa [#allocation3], 1
    %s385 = scalar_lea.sflag [#allocation3], 1
    %386 = vsyncpa %s385, 1
    %387 = vsyncpa [#allocation6], 1
    %s388 = scalar_lea.sflag [#allocation6], 1
    %389 = vsyncpa %s388, 1
    %390 = vsyncpa [#allocation4], 1
    %s391 = scalar_lea.sflag [#allocation4], 1
    %392 = vsyncpa %s391, 1

</llo_original>
